<compile_context>
chip_gen: v6e
topology: v6e:2x2x1
jax: 0.10.0
libtpu: 0.0.40
codegen_flags: <defaults>
</compile_context>

<pallas_src>
import functools

import jax
import jax.numpy as jnp
import numpy as np
from jax import lax
from jax.experimental import pallas as pl
from jax.experimental.pallas import tpu as pltpu

EPS = 1e-5                              # nn.InstanceNorm2d default eps
VMEM_LIMIT_BYTES = 32 * 1024 * 1024     # safe scoped-VMEM limit on v5e/v6e/v7x
TILE_BUDGET_BYTES = 12 * 1024 * 1024    # per-grid-step working-set budget


# --------------------------------------------------------------------------
# tile pickers
# --------------------------------------------------------------------------
def _pick_stats_tile(H):
    for t in (32, 16, 8):
        if H % t == 0:
            return t
    return H


def _pick_conv_tile(Ho, Wo, Cin, Cm, Cout, budget=TILE_BUDGET_BYTES):
    # TH output rows per grid step.  TH must be even, divide Ho and be either
    # a multiple of 8 or the full Ho so output blocks satisfy the (8,128)
    # sublane constraint.  Pick the largest TH under the VMEM budget.
    cands = [th for th in range(2, Ho + 1, 2)
             if Ho % th == 0 and (th % 8 == 0 or th == Ho)]
    if not cands:
        return Ho
    best = cands[0]
    C = max(Cin, Cm)
    for th in sorted(cands):
        half = th // 2
        est = (
            (half + 2) * (Wo // 2) * Cin * 2        # xbuf (bf16)
            + 2 * (th + 2) * (Wo + 2) * C * 2       # padded window + a copy
            + 3 * th * Wo * 3 * C * 2               # im2col slabs (bf16)
            + 2 * th * Wo * Cout * 4                # f32 acc + residual
            + 2 * th * Wo * Cout * 4                # double-buffered out tile
            + (th + 2) * Wo * Cm * 2                # y1 window (bf16)
        )
        if est <= budget:
            best = th
    return best


# --------------------------------------------------------------------------
# Pallas kernel 1: per-(n, c) InstanceNorm statistics on the block input x
# grid = (N, H // TR); row tiles accumulate sum / sum-of-squares in VMEM
# scratch and finalize on the last row tile (accumulator pattern).
# --------------------------------------------------------------------------
def _stats_kernel(x_ref, mean_ref, rstd_ref, sum_ref, ssq_ref, *, count):
    t = pl.program_id(1)

    @pl.when(t == 0)
    def _():
        sum_ref[...] = jnp.zeros_like(sum_ref)
        ssq_ref[...] = jnp.zeros_like(ssq_ref)

    xb = x_ref[0]                                        # (TR, W, C) f32
    sum_ref[...] += jnp.sum(xb, axis=(0, 1))[None, :]
    ssq_ref[...] += jnp.sum(xb * xb, axis=(0, 1))[None, :]

    @pl.when(t == pl.num_programs(1) - 1)
    def _():
        mean = sum_ref[...] / count                      # (1, C)
        var = jnp.maximum(ssq_ref[...] / count - mean * mean, 0.0)
        mean_ref[0] = mean
        rstd_ref[0] = lax.rsqrt(var + EPS)


def instnorm_stats(x_nhwc):
    N, H, W, C = x_nhwc.shape
    tr = _pick_stats_tile(H)
    kernel = functools.partial(_stats_kernel, count=float(H * W))
    mean, rstd = pl.pallas_call(
        kernel,
        out_shape=(jax.ShapeDtypeStruct((N, 1, C), jnp.float32),
                   jax.ShapeDtypeStruct((N, 1, C), jnp.float32)),
        grid=(N, H // tr),
        in_specs=[pl.BlockSpec((1, tr, W, C), lambda n, t: (n, t, 0, 0))],
        out_specs=(pl.BlockSpec((1, 1, C), lambda n, t: (n, 0, 0)),
                   pl.BlockSpec((1, 1, C), lambda n, t: (n, 0, 0))),
        scratch_shapes=[pltpu.VMEM((1, C), jnp.float32),
                        pltpu.VMEM((1, C), jnp.float32)],
        compiler_params=pltpu.CompilerParams(
            dimension_semantics=("parallel", "arbitrary"),
            vmem_limit_bytes=VMEM_LIMIT_BYTES),
    )(x_nhwc)
    return mean, rstd


# --------------------------------------------------------------------------
# Pallas kernel 2: conv_r1 fused =
#   InstanceNorm affine + ReLU + nearest-2x upsample + ReflectionPad2d(1)
#   + 3x3 conv + bias, plus the fused y1 statistics (sum / sum-of-squares).
# Activation input xh (H edge-padded source) stays in HBM (pl.ANY); only the
# (half+2)-row window for this step is DMA'd into VMEM.
# --------------------------------------------------------------------------
def _conv_r1_kernel(xh_hbm, sc_ref, sh_ref, w_ref, b_ref,
                    y_ref, sum_ref, ssq_ref,
                    xbuf, sem, *, TH, Ws, Cin, Cout):
    n = pl.program_id(0)
    t = pl.program_id(1)
    half = TH // 2
    R = half + 2
    Wo = 2 * Ws

    # DMA only the rows this step needs (source rows + 1-row halo each side).
    cp = pltpu.make_async_copy(xh_hbm.at[n, pl.ds(t * half, R)], xbuf, sem.at[0])
    cp.start()
    cp.wait()

    # fused InstanceNorm affine + ReLU (scale/shift precomputed per (n, c))
    xs = xbuf[...].astype(jnp.float32)                      # (R, Ws, Cin)
    xs = jnp.maximum(xs * sc_ref[...] + sh_ref[...], 0.0)
    xs = xs.astype(jnp.bfloat16)

    # in-kernel W duplication (nearest 2x) + 1-col edge pad
    dup = jnp.concatenate([xs[:, :, None, :], xs[:, :, None, :]], axis=2)
    dup = dup.reshape(R, Wo, Cin)
    xw = jnp.concatenate([dup[:, :1], dup, dup[:, Wo - 1:Wo]], axis=1)  # (R, Wo+2, Cin)

    # in-kernel H duplication + 1-row halo (== fused upsample + reflect pad)
    mid = xw[1:R - 1]
    mid = jnp.concatenate([mid[:, None], mid[:, None]], axis=1).reshape(TH, Wo + 2, Cin)
    up = jnp.concatenate([xw[0:1], mid, xw[R - 1:R]], axis=0)           # (TH+2, Wo+2, Cin)

    # 3 accumulating MXU dots over ky (im2col split to cut VMEM pressure)
    acc = jnp.zeros((TH * Wo, Cout), jnp.float32)
    for dy in range(3):
        slab = jnp.concatenate([up[dy:dy + TH, dx:dx + Wo] for dx in range(3)],
                               axis=-1).reshape(TH * Wo, 3 * Cin)
        acc = acc + jnp.dot(slab, w_ref[dy], preferred_element_type=jnp.float32)
    acc = acc + b_ref[...]

    # lane-dense store of y1 as (TH, Wo*Cout)
    y_ref[0] = acc.reshape(TH, Wo * Cout).astype(y_ref.dtype)

    # fused second-InstanceNorm statistics (accumulated across the t axis)
    @pl.when(t == 0)
    def _():
        sum_ref[...] = jnp.zeros_like(sum_ref)
        ssq_ref[...] = jnp.zeros_like(ssq_ref)

    sum_ref[...] += jnp.sum(acc, axis=0)[None, None, :]
    ssq_ref[...] += jnp.sum(acc * acc, axis=0)[None, None, :]


def conv_r1_fused(xh, scale, shift, w_mat, bias, TH):
    N, Hp, Ws, Cin = xh.shape
    Hs = Hp - 2
    Ho, Wo = 2 * Hs, 2 * Ws
    Cout = w_mat.shape[-1]
    half = TH // 2
    kernel = functools.partial(_conv_r1_kernel, TH=TH, Ws=Ws, Cin=Cin, Cout=Cout)
    return pl.pallas_call(
        kernel,
        out_shape=(jax.ShapeDtypeStruct((N, Ho, Wo * Cout), jnp.bfloat16),
                   jax.ShapeDtypeStruct((N, 1, Cout), jnp.float32),
                   jax.ShapeDtypeStruct((N, 1, Cout), jnp.float32)),
        grid=(N, Ho // TH),
        in_specs=[
            pl.BlockSpec(memory_space=pl.ANY),                         # xh (HBM)
            pl.BlockSpec((1, 1, Cin), lambda n, t: (n, 0, 0)),         # scale
            pl.BlockSpec((1, 1, Cin), lambda n, t: (n, 0, 0)),         # shift
            pl.BlockSpec((3, 3 * Cin, Cout), lambda n, t: (0, 0, 0)),  # weights
            pl.BlockSpec((1, Cout), lambda n, t: (0, 0)),              # bias
        ],
        out_specs=(
            pl.BlockSpec((1, TH, Wo * Cout), lambda n, t: (n, t, 0)),
            pl.BlockSpec((1, 1, Cout), lambda n, t: (n, 0, 0)),
            pl.BlockSpec((1, 1, Cout), lambda n, t: (n, 0, 0)),
        ),
        scratch_shapes=[pltpu.VMEM((half + 2, Ws, Cin), jnp.bfloat16),
                        pltpu.SemaphoreType.DMA((1,))],
        compiler_params=pltpu.CompilerParams(
            dimension_semantics=("parallel", "arbitrary"),
            vmem_limit_bytes=VMEM_LIMIT_BYTES),
    )(xh, scale, shift, w_mat, bias)


# --------------------------------------------------------------------------
# Pallas kernel 3: conv_r2 + residual branch fused =
#   [InstanceNorm affine + ReLU + ReflectionPad2d(1) + 3x3 conv + bias] on y1
#   + [nearest-2x upsample + 1x1 conv + bias] on the raw source + final add.
# y1 and xh stay in HBM; only row windows are DMA'd per step.  The reflection
# halo rows are fetched by two extra single-row DMAs with reflected indices.
# --------------------------------------------------------------------------
def _conv_r2_kernel(y_hbm, xh_hbm, sc_ref, sh_ref, w2_ref, b2_ref,
                    wl_ref, bl_ref, o_ref,
                    ybuf, xbuf, sems, *, TH, Ho, Wo, Ws, Cin, Cm, Cout):
    n = pl.program_id(0)
    t = pl.program_id(1)
    half = TH // 2
    base = t * TH

    r_top = jnp.where(base == 0, 1, base - 1)               # reflect row -1 -> 1
    r_bot = jnp.where(base + TH >= Ho, Ho - 2, base + TH)    # reflect Ho -> Ho-2

    cps = [
        pltpu.make_async_copy(y_hbm.at[n, pl.ds(base, TH)],
                              ybuf.at[pl.ds(1, TH)], sems.at[0]),
        pltpu.make_async_copy(y_hbm.at[n, pl.ds(r_top, 1)],
                              ybuf.at[pl.ds(0, 1)], sems.at[1]),
        pltpu.make_async_copy(y_hbm.at[n, pl.ds(r_bot, 1)],
                              ybuf.at[pl.ds(TH + 1, 1)], sems.at[2]),
        pltpu.make_async_copy(xh_hbm.at[n, pl.ds(t * half + 1, half)],
                              xbuf, sems.at[3]),
    ]
    for cp in cps:
        cp.start()
    for cp in cps:
        cp.wait()

    # ---- main branch: reflect-pad columns + fused norm affine + ReLU ----
    win = ybuf[...].reshape(TH + 2, Wo, Cm)
    win = jnp.concatenate([win[:, 1:2], win, win[:, Wo - 2:Wo - 1]], axis=1)
    win = jnp.maximum(win.astype(jnp.float32) * sc_ref[...] + sh_ref[...], 0.0)
    win = win.astype(jnp.bfloat16)                           # (TH+2, Wo+2, Cm)

    acc = jnp.zeros((TH * Wo, Cout), jnp.float32)
    for dy in range(3):
        slab = jnp.concatenate([win[dy:dy + TH, dx:dx + Wo] for dx in range(3)],
                               axis=-1).reshape(TH * Wo, 3 * Cm)
        acc = acc + jnp.dot(slab, w2_ref[dy], preferred_element_type=jnp.float32)
    acc = acc + b2_ref[...]

    # ---- residual branch: 1x1 conv on raw source rows, then duplicate rows
    #      and columns of the (small) result (1x1 conv commutes with nearest
    #      upsampling), halving MXU work and DMA bytes ----
    xr = xbuf[...]                                           # (half, Ws, Cin)
    res = jnp.dot(xr.reshape(half * Ws, Cin), wl_ref[...],
                  preferred_element_type=jnp.float32)
    res = (res + bl_ref[...]).reshape(half, Ws, Cout)
    res = jnp.concatenate([res[:, :, None, :], res[:, :, None, :]],
                          axis=2).reshape(half, Wo, Cout)
    res = jnp.concatenate([res[:, None], res[:, None]],
                          axis=1).reshape(TH, Wo, Cout)

    out = acc.reshape(TH, Wo, Cout) + res
    o_ref[0] = out.reshape(TH, Wo * Cout).astype(o_ref.dtype)   # lane-dense store


def conv_r2_fused(y1_flat, xh, scale, shift, w2_mat, bias2, wl_mat, biasl, TH):
    N, Ho, WC = y1_flat.shape
    Cout = w2_mat.shape[-1]
    Cm = w2_mat.shape[1] // 3
    Wo = WC // Cm
    Ws = Wo // 2
    Cin = wl_mat.shape[0]
    half = TH // 2
    kernel = functools.partial(_conv_r2_kernel, TH=TH, Ho=Ho, Wo=Wo, Ws=Ws,
                               Cin=Cin, Cm=Cm, Cout=Cout)
    return pl.pallas_call(
        kernel,
        out_shape=jax.ShapeDtypeStruct((N, Ho, Wo * Cout), jnp.float32),
        grid=(N, Ho // TH),
        in_specs=[
            pl.BlockSpec(memory_space=pl.ANY),                        # y1 (HBM)
            pl.BlockSpec(memory_space=pl.ANY),                        # xh (HBM)
            pl.BlockSpec((1, 1, Cm), lambda n, t: (n, 0, 0)),         # scale2
            pl.BlockSpec((1, 1, Cm), lambda n, t: (n, 0, 0)),         # shift2
            pl.BlockSpec((3, 3 * Cm, Cout), lambda n, t: (0, 0, 0)),  # w2
            pl.BlockSpec((1, Cout), lambda n, t: (0, 0)),             # bias2
            pl.BlockSpec((Cin, Cout), lambda n, t: (0, 0)),           # wl (1x1)
            pl.BlockSpec((1, Cout), lambda n, t: (0, 0)),             # biasl
        ],
        out_specs=pl.BlockSpec((1, TH, Wo * Cout), lambda n, t: (n, t, 0)),
        scratch_shapes=[pltpu.VMEM((TH + 2, Wo * Cm), jnp.bfloat16),
                        pltpu.VMEM((half, Ws, Cin), jnp.bfloat16),
                        pltpu.SemaphoreType.DMA((4,))],
        compiler_params=pltpu.CompilerParams(
            dimension_semantics=("parallel", "parallel"),
            vmem_limit_bytes=VMEM_LIMIT_BYTES),
    )(y1_flat, xh, scale, shift, w2_mat, bias2, wl_mat, biasl)


# --------------------------------------------------------------------------
# spectral_norm reparameterization (wrapper-side, tiny)
# --------------------------------------------------------------------------
def spectral_normalize(w_oihw, key, n_iters=1):
    # TODO(synk): torch.nn.utils.spectral_norm keeps a persistent `u` buffer;
    # here it is replaced by a deterministic PRNG draw + power iteration.
    cout = w_oihw.shape[0]
    wm = w_oihw.reshape(cout, -1)
    u = jax.random.normal(key, (cout,), jnp.float32)
    u = u / (jnp.linalg.norm(u) + 1e-12)
    for _ in range(n_iters):
        v = wm.T @ u
        v = v / (jnp.linalg.norm(v) + 1e-12)
        u = wm @ v
        u = u / (jnp.linalg.norm(u) + 1e-12)
    sigma = u @ (wm @ v)
    return w_oihw / sigma


# --------------------------------------------------------------------------
# public wrapper: NCHW in / NCHW out (PyTorch convention)
# --------------------------------------------------------------------------
def residual_block_up(x_nchw, params, upsample_scale=2):
    if upsample_scale != 2:
        # TODO(synk): only nearest scale_factor=2 is fused; out_spatial /
        # other scales need a different in-kernel duplication pattern.
        raise NotImplementedError("only nearest 2x upsampling is implemented")

    N, Cin, Hs, Ws = x_nchw.shape
    Cout = params["w1"].shape[-1]
    Ho, Wo = 2 * Hs, 2 * Ws
    TH = _pick_conv_tile(Ho, Wo, Cin, Cout, Cout)

    x = jnp.transpose(x_nchw, (0, 2, 3, 1)).astype(jnp.float32)     # NHWC f32

    # norm_r1 statistics -> per-(n,c) affine folded into conv_r1's prologue
    mean1, rstd1 = instnorm_stats(x)
    scale1 = params["g1"][None, None, :] * rstd1
    shift1 = params["b1"][None, None, :] - mean1 * scale1

    # only a cheap 1-row H edge pad is materialized (bf16); the W duplication
    # and all halos are done in-kernel.
    xh = jnp.pad(x, ((0, 0), (1, 1), (0, 0), (0, 0)),
                 mode="edge").astype(jnp.bfloat16)

    w1m = params["w1"].reshape(3, 3 * Cin, Cout).astype(jnp.bfloat16)
    y1_flat, sum2, ssq2 = conv_r1_fused(
        xh, scale1, shift1, w1m,
        params["bias1"].reshape(1, Cout).astype(jnp.float32), TH)

    # norm_r2 statistics come out of the fused accumulators (no extra pass)
    count2 = float(Ho * Wo)
    mean2 = sum2 / count2
    var2 = jnp.maximum(ssq2 / count2 - mean2 * mean2, 0.0)
    rstd2 = lax.rsqrt(var2 + EPS)
    scale2 = params["g2"][None, None, :] * rstd2
    shift2 = params["b2"][None, None, :] - mean2 * scale2

    w2m = params["w2"].reshape(3, 3 * Cout, Cout).astype(jnp.bfloat16)
    wlm = params["wl"].reshape(Cin, Cout).astype(jnp.bfloat16)
    out_flat = conv_r2_fused(
        y1_flat, xh, scale2, shift2, w2m,
        params["bias2"].reshape(1, Cout).astype(jnp.float32),
        wlm, params["biasl"].reshape(1, Cout).astype(jnp.float32), TH)

    out = out_flat.reshape(N, Ho, Wo, Cout)
    return jnp.transpose(out, (0, 3, 1, 2))


# --------------------------------------------------------------------------
# Pure-JAX reference (correctness check only)
# --------------------------------------------------------------------------
def upsample_nearest(x_nchw, scale):
    x = jnp.repeat(x_nchw, scale, axis=2)
    return jnp.repeat(x, scale, axis=3)


def ref_forward(x, params, scale=2):
    def inorm_relu(x, g, b):
        mean = x.mean(axis=(2, 3), keepdims=True)
        var = ((x - mean) ** 2).mean(axis=(2, 3), keepdims=True)
        y = (x - mean) / jnp.sqrt(var + EPS) * g[None, :, None, None] \
            + b[None, :, None, None]
        return jnp.maximum(y, 0.0)

    def conv(x_nchw, w_hwio, bias, pad):
        xn = jnp.transpose(x_nchw, (0, 2, 3, 1))
        if pad:
            xn = jnp.pad(xn, ((0, 0), (pad, pad), (pad, pad), (0, 0)),
                         mode="reflect")
        y = lax.conv_general_dilated(
            xn, w_hwio, (1, 1), "VALID",
            dimension_numbers=("NHWC", "HWIO", "NHWC"),
            precision=lax.Precision.HIGHEST)
        y = y + bias[None, None, None, :]
        return jnp.transpose(y, (0, 3, 1, 2))

    out = inorm_relu(x, params["g1"], params["b1"])
    out = upsample_nearest(out, scale)
    out = conv(out, params["w1"], params["bias1"], params["w1"].shape[0] // 2)
    out = inorm_relu(out, params["g2"], params["b2"])
    out = conv(out, params["w2"], params["bias2"], params["w2"].shape[0] // 2)
    res = upsample_nearest(x, scale)
    res = conv(res, params["wl"], params["biasl"], 0)
    return res + out


if __name__ == "__main__":
    key = jax.random.PRNGKey(0)
    ks = jax.random.split(key, 10)

    N, Cin, Cout, S, K = 2, 4, 8, 16, 3
    x = jax.random.normal(ks[0], (N, Cin, S, S), jnp.float32)

    def init_conv(kw, kb, ksn, cin, cout, ksize):
        w = jax.random.normal(kw, (cout, cin, ksize, ksize), jnp.float32) * 0.2
        w = spectral_normalize(w, ksn)                 # spectral_norm reparam
        b = jax.random.normal(kb, (cout,), jnp.float32) * 0.1
        return jnp.transpose(w, (2, 3, 1, 0)), b       # OIHW -> HWIO

    w1, bias1 = init_conv(ks[1], ks[2], ks[3], Cin, Cout, K)    # conv_r1
    w2, bias2 = init_conv(ks[4], ks[5], ks[6], Cout, Cout, K)   # conv_r2
    wl, biasl = init_conv(ks[7], ks[8], ks[9], Cin, Cout, 1)    # conv_l (1x1)

    # InstanceNorm affine params (perturbed so the affine path is exercised)
    g1 = jnp.ones((Cin,), jnp.float32) + 0.1 * jnp.arange(Cin, dtype=jnp.float32)
    b1 = 0.05 * jnp.arange(Cin, dtype=jnp.float32)
    g2 = jnp.ones((Cout,), jnp.float32) - 0.05 * jnp.arange(Cout, dtype=jnp.float32)
    b2 = -0.03 * jnp.arange(Cout, dtype=jnp.float32)

    params = dict(g1=g1, b1=b1, g2=g2, b2=b2,
                  w1=w1, bias1=bias1, w2=w2, bias2=bias2, wl=wl, biasl=biasl)

    out = residual_block_up(x, params, upsample_scale=2)
    out = jax.block_until_ready(out)
    assert out.shape == (N, Cout, 2 * S, 2 * S)

    ref = jax.block_until_ready(ref_forward(x, params, 2))
    np.testing.assert_allclose(np.asarray(out), np.asarray(ref),
                               atol=2e-2, rtol=2e-2)

    print("KERNEL_OK")
</pallas_src>

<mosaic_0001>
module attributes {stable_mosaic.version = 11 : i64} {
  func.func @_stats_kernel(%arg0: i32, %arg1: i32, %arg2: memref<1x16x16x4xf32, #tpu.memory_space<vmem>>, %arg3: memref<1x1x4xf32, #tpu.memory_space<vmem>>, %arg4: memref<1x1x4xf32, #tpu.memory_space<vmem>>, %arg5: memref<1x4xf32, #tpu.memory_space<vmem>>, %arg6: memref<1x4xf32, #tpu.memory_space<vmem>>) attributes {dimension_semantics = [#tpu.dimension_semantics<parallel>, #tpu.dimension_semantics<arbitrary>], iteration_bounds = array<i64: 2, 1>, scalar_prefetch = 0 : i64, scratch_operands = 2 : i64, tpu.core_type = #tpu.core_type<tc>, window_params = [{transform_indices = @transform_0, window_bounds = array<i64: 1, 16, 16, 4>}, {transform_indices = @transform_1, window_bounds = array<i64: 1, 1, 4>}, {transform_indices = @transform_2, window_bounds = array<i64: 1, 1, 4>}]} {
    %c0_i32 = arith.constant 0 : i32
    %0 = arith.cmpi eq, %arg1, %c0_i32 : i32
    %1 = arith.extui %0 : i1 to i32
    %c0_i32_0 = arith.constant 0 : i32
    %2 = arith.cmpi ne, %1, %c0_i32_0 : i32
    scf.if %2 {
      %cst_15 = arith.constant 0.000000e+00 : f32
      %19 = vector.broadcast %cst_15 : f32 to vector<1x4xf32>
      %c0_16 = arith.constant 0 : index
      %c0_17 = arith.constant 0 : index
      %20 = vector.load %arg5[%c0_16, %c0_17] : memref<1x4xf32, #tpu.memory_space<vmem>>, vector<1x4xf32>
      tpu.vector_store %arg5[%c0_16, %c0_17], %19 {strides = array<i32>} : memref<1x4xf32, #tpu.memory_space<vmem>>, vector<1x4xf32>,
      %cst_18 = arith.constant 0.000000e+00 : f32
      %21 = vector.broadcast %cst_18 : f32 to vector<1x4xf32>
      %c0_19 = arith.constant 0 : index
      %c0_20 = arith.constant 0 : index
      %22 = vector.load %arg6[%c0_19, %c0_20] : memref<1x4xf32, #tpu.memory_space<vmem>>, vector<1x4xf32>
      tpu.vector_store %arg6[%c0_19, %c0_20], %21 {strides = array<i32>} : memref<1x4xf32, #tpu.memory_space<vmem>>, vector<1x4xf32>,
    } else {
    }
    %c0 = arith.constant 0 : index
    %c0_1 = arith.constant 0 : index
    %c0_2 = arith.constant 0 : index
    %c0_3 = arith.constant 0 : index
    %3 = vector.load %arg2[%c0, %c0_1, %c0_2, %c0_3] : memref<1x16x16x4xf32, #tpu.memory_space<vmem>>, vector<1x16x16x4xf32>
    %4 = vector.shape_cast %3 : vector<1x16x16x4xf32> to vector<16x16x4xf32>
    %c0_4 = arith.constant 0 : index
    %c0_5 = arith.constant 0 : index
    %5 = vector.load %arg5[%c0_4, %c0_5] : memref<1x4xf32, #tpu.memory_space<vmem>>, vector<1x4xf32>
    %cst = arith.constant dense<0.000000e+00> : vector<4xf32>
    %6 = vector.multi_reduction <add>, %4, %cst [0, 1] : vector<16x16x4xf32> to vector<4xf32>
    %7 = vector.shape_cast %6 : vector<4xf32> to vector<1x4xf32>
    %8 = arith.addf %5, %7 : vector<1x4xf32>
    %c0_6 = arith.constant 0 : index
    %c0_7 = arith.constant 0 : index
    %9 = vector.load %arg5[%c0_6, %c0_7] : memref<1x4xf32, #tpu.memory_space<vmem>>, vector<1x4xf32>
    tpu.vector_store %arg5[%c0_6, %c0_7], %8 {strides = array<i32>} : memref<1x4xf32, #tpu.memory_space<vmem>>, vector<1x4xf32>,
    %c0_8 = arith.constant 0 : index
    %c0_9 = arith.constant 0 : index
    %10 = vector.load %arg6[%c0_8, %c0_9] : memref<1x4xf32, #tpu.memory_space<vmem>>, vector<1x4xf32>
    %11 = arith.mulf %4, %4 : vector<16x16x4xf32>
    %cst_10 = arith.constant dense<0.000000e+00> : vector<4xf32>
    %12 = vector.multi_reduction <add>, %11, %cst_10 [0, 1] : vector<16x16x4xf32> to vector<4xf32>
    %13 = vector.shape_cast %12 : vector<4xf32> to vector<1x4xf32>
    %14 = arith.addf %10, %13 : vector<1x4xf32>
    %c0_11 = arith.constant 0 : index
    %c0_12 = arith.constant 0 : index
    %15 = vector.load %arg6[%c0_11, %c0_12] : memref<1x4xf32, #tpu.memory_space<vmem>>, vector<1x4xf32>
    tpu.vector_store %arg6[%c0_11, %c0_12], %14 {strides = array<i32>} : memref<1x4xf32, #tpu.memory_space<vmem>>, vector<1x4xf32>,
    %c0_i32_13 = arith.constant 0 : i32
    %16 = arith.cmpi eq, %arg1, %c0_i32_13 : i32
    %17 = arith.extui %16 : i1 to i32
    %c0_i32_14 = arith.constant 0 : i32
    %18 = arith.cmpi ne, %17, %c0_i32_14 : i32
    scf.if %18 {
      %c0_15 = arith.constant 0 : index
      %c0_16 = arith.constant 0 : index
      %19 = vector.load %arg5[%c0_15, %c0_16] : memref<1x4xf32, #tpu.memory_space<vmem>>, vector<1x4xf32>
      %cst_17 = arith.constant 2.560000e+02 : f32
      %20 = vector.broadcast %cst_17 : f32 to vector<1x4xf32>
      %21 = arith.divf %19, %20 : vector<1x4xf32>
      %c0_18 = arith.constant 0 : index
      %c0_19 = arith.constant 0 : index
      %22 = vector.load %arg6[%c0_18, %c0_19] : memref<1x4xf32, #tpu.memory_space<vmem>>, vector<1x4xf32>
      %cst_20 = arith.constant 2.560000e+02 : f32
      %23 = vector.broadcast %cst_20 : f32 to vector<1x4xf32>
      %24 = arith.divf %22, %23 : vector<1x4xf32>
      %25 = arith.mulf %21, %21 : vector<1x4xf32>
      %26 = arith.subf %24, %25 : vector<1x4xf32>
      %cst_21 = arith.constant 0.000000e+00 : f32
      %27 = vector.broadcast %cst_21 : f32 to vector<1x4xf32>
      %28 = arith.maximumf %26, %27 : vector<1x4xf32>
      %c0_22 = arith.constant 0 : index
      %c0_23 = arith.constant 0 : index
      %c0_24 = arith.constant 0 : index
      %29 = vector.load %arg3[%c0_22, %c0_23, %c0_24] : memref<1x1x4xf32, #tpu.memory_space<vmem>>, vector<1x1x4xf32>
      %30 = vector.shape_cast %29 : vector<1x1x4xf32> to vector<1x4xf32>
      %31 = vector.shape_cast %21 : vector<1x4xf32> to vector<1x1x4xf32>
      tpu.vector_store %arg3[%c0_22, %c0_23, %c0_24], %31 {strides = array<i32>} : memref<1x1x4xf32, #tpu.memory_space<vmem>>, vector<1x1x4xf32>,
      %cst_25 = arith.constant 9.99999974E-6 : f32
      %32 = vector.broadcast %cst_25 : f32 to vector<1x4xf32>
      %33 = arith.addf %28, %32 : vector<1x4xf32>
      %34 = math.rsqrt %33 : vector<1x4xf32>
      %c0_26 = arith.constant 0 : index
      %c0_27 = arith.constant 0 : index
      %c0_28 = arith.constant 0 : index
      %35 = vector.load %arg4[%c0_26, %c0_27, %c0_28] : memref<1x1x4xf32, #tpu.memory_space<vmem>>, vector<1x1x4xf32>
      %36 = vector.shape_cast %35 : vector<1x1x4xf32> to vector<1x4xf32>
      %37 = vector.shape_cast %34 : vector<1x4xf32> to vector<1x1x4xf32>
      tpu.vector_store %arg4[%c0_26, %c0_27, %c0_28], %37 {strides = array<i32>} : memref<1x1x4xf32, #tpu.memory_space<vmem>>, vector<1x1x4xf32>,
    } else {
    }
    return
  }
  func.func @transform_0(%arg0: i32, %arg1: i32) -> (i32, i32, i32, i32) {
    %c0_i32 = arith.constant 0 : i32
    %c0_i32_0 = arith.constant 0 : i32
    %c0_i32_1 = arith.constant 0 : i32
    return %arg0, %arg1, %c0_i32, %c0_i32_0 : i32, i32, i32, i32
  }
  func.func @transform_1(%arg0: i32, %arg1: i32) -> (i32, i32, i32) {
    %c0_i32 = arith.constant 0 : i32
    %c0_i32_0 = arith.constant 0 : i32
    %c0_i32_1 = arith.constant 0 : i32
    return %arg0, %c0_i32, %c0_i32_0 : i32, i32, i32
  }
  func.func @transform_2(%arg0: i32, %arg1: i32) -> (i32, i32, i32) {
    %c0_i32 = arith.constant 0 : i32
    %c0_i32_0 = arith.constant 0 : i32
    %c0_i32_1 = arith.constant 0 : i32
    return %arg0, %c0_i32, %c0_i32_0 : i32, i32, i32
  }
}

</mosaic_0001>

<llo_original>
// kernel: tpu_custom_call.1
$region0: #{tpu_custom_call.1}
  #allocation0 [shape = 'u32[]', space=smem, size = 0x4, offset = 0x4, fixed_abs, tag = 'smem constant byte address 0x4 - core index']
  #allocation1 [shape = 'u32[144,128]{1,0:T(1,128)}', space=vmem, size = 0x12000, scoped, tag = 'internal scratch']
  #allocation2 [shape = 'f32[1,4]{1,0:T(1,128)}', space=vmem, size = 0x200, scoped, tag = 'scratch operand']
  #allocation3 [shape = 'f32[1,4]{1,0:T(1,128)}', space=vmem, size = 0x200, scoped, tag = 'scratch operand']
  %s0 = inlined_call_operand.vmem [shape: f32[2,16,16,4], index: 0, kind: input, shape index: {}]
  %s1 = inlined_call_operand.hbm [shape: f32[2,1,4], index: 1, kind: output, shape index: {0}]
  %s2 = inlined_call_operand.hbm [shape: f32[2,1,4], index: 2, kind: output, shape index: {1}]
  %3 = xla_tuple %s1, %s2
  %s4 = sld [smem:[#allocation0]]
  $region53: #{tpu_custom_call.1} parent=0
    _
  %s6 = ssub.s32 1, %s4
  %s7 = scalar_select 0, %s6, %s4
  $region1: #{tpu_custom_call.1} parent=0
    #allocation4 [shape = 'u8[1024]{0}', space=vmem, size = 0x400, scoped, tag = 'output window, operand 0']
    #allocation5 [shape = 's32[2]{0}', space=sflag, size = 0x8, scoped, tag = 'scoped memory for tpu_custom_call.1']
    #allocation6 [shape = 'u8[1024]{0}', space=vmem, size = 0x400, scoped, tag = 'output window, operand 1']
    #allocation7 [shape = 's32[2]{0}', space=sflag, size = 0x8, scoped, tag = 'scoped memory for tpu_custom_call.1']
    %8 = vsyncpa [#allocation5], 0
    %s9 = scalar_lea.sflag [#allocation5], 1
    %10 = vsyncpa %s9, 0
    %11 = vsyncpa [#allocation7], 0
    %s12 = scalar_lea.sflag [#allocation7], 1
    %13 = vsyncpa %s12, 0
    loop: start=0, step=1, limit=4
    $region2: #{tpu_custom_call.1} parent=1 // loop_pre_header
      _
    $region3: #{tpu_custom_call.1} parent=1 // loop_header
      %s15 = sphi 0, %s19
      %p16 = scmp.ge.s32.totalorder %s15, 4
      %s22 = sphi 0, %s34
      %s23 = sphi 0, %s30
      %s24 = sphi 0, %s22
      %s25 = sphi 0, %s23
      %s26 = sphi 0, %s24
      %s27 = sphi 0, %s25
      %s39 = sphi 0, %s41
      %s42 = sphi 0, %s39
      %s43 = sphi 0, %s42
      %s59 = sphi 0, %s43
      %s65 = sphi 0, %s67
      %s68 = sphi 0, %s65
      %s69 = sphi 0, %s68
      %s85 = sphi 0, %s69
      %s91 = sphi 0, %s93
      %s94 = sphi 0, %s91
      %s95 = sphi 0, %s94
      %s111 = sphi 0, %s95
    $region4: #{tpu_custom_call.1} parent=1 // loop_header_branch
      %18 = sbr.rel (%p16) target = $region8
    $region5: #{tpu_custom_call.1} parent=1 // loop_body
      %s20 = ssub.s32 %s15, 1
      %s21 = ssub.s32 %s15, 2
      %s28 = sadd.s32 1, %s23
      %p29 = scmp.ge.s32.totalorder %s28, 1
      %s30 = scalar_select %p29, 0, %s28
      %s31 = sadd.s32 1, %s22
      %s32 = scalar_select %p29, %s31, %s22
      %p33 = scmp.ge.s32.totalorder %s32, 2
      %s34 = scalar_select %p33, 0, %s32
      %s35 = ssub.s32 %s22, %s34
      %s36 = ssub.s32 %s23, %s30
      %s37 = sor.u32 %s35, %s36
      %p38 = scmp.eq.s32.totalorder %s37, 0
      %s40 = sadd.s32 %s39, 1
      %s41 = scalar_select %p38, %s39, %s40
      %p44 = pneg %p38
      %p45 = scmp.eq.s32.totalorder %s15, 1
      %p46 = por %p44, %p45
      %p47 = scmp.ne.s32.totalorder %s39, %s42
      %p48 = scmp.eq.s32.totalorder %s15, 0
      %p49 = por %p47, %p48
      %p50 = scmp.ne.s32.totalorder %s39, %s42
      %p51 = scmp.eq.s32.totalorder %s20, 1
      %p52 = por %p50, %p51
      %p53 = scmp.ne.s32.totalorder %s42, %s43
      %p54 = scmp.eq.s32.totalorder %s20, 0
      %p55 = por %p53, %p54
      %p56 = scmp.ne.s32.totalorder %s42, %s43
      %p57 = scmp.eq.s32.totalorder %s21, 1
      %p58 = por %p56, %p57
      %p60 = scmp.ne.s32.totalorder %s43, %s59
      %p61 = scmp.eq.s32.totalorder %s21, 0
      %p62 = por %p60, %p61
      %s63 = ssub.s32 %s22, %s34
      %p64 = scmp.eq.s32.totalorder %s63, 0
      %s66 = sadd.s32 %s65, 1
      %s67 = scalar_select %p64, %s65, %s66
      %p70 = pneg %p64
      %p71 = scmp.eq.s32.totalorder %s15, 1
      %p72 = por %p70, %p71
      %p73 = scmp.ne.s32.totalorder %s65, %s68
      %p74 = scmp.eq.s32.totalorder %s15, 0
      %p75 = por %p73, %p74
      %p76 = scmp.ne.s32.totalorder %s65, %s68
      %p77 = scmp.eq.s32.totalorder %s20, 1
      %p78 = por %p76, %p77
      %p79 = scmp.ne.s32.totalorder %s68, %s69
      %p80 = scmp.eq.s32.totalorder %s20, 0
      %p81 = por %p79, %p80
      %p82 = scmp.ne.s32.totalorder %s68, %s69
      %p83 = scmp.eq.s32.totalorder %s21, 1
      %p84 = por %p82, %p83
      %p86 = scmp.ne.s32.totalorder %s69, %s85
      %p87 = scmp.eq.s32.totalorder %s21, 0
      %p88 = por %p86, %p87
      %s89 = ssub.s32 %s22, %s34
      %p90 = scmp.eq.s32.totalorder %s89, 0
      %s92 = sadd.s32 %s91, 1
      %s93 = scalar_select %p90, %s91, %s92
      %p96 = pneg %p90
      %p97 = scmp.eq.s32.totalorder %s15, 1
      %p98 = por %p96, %p97
      %p99 = scmp.ne.s32.totalorder %s91, %s94
      %p100 = scmp.eq.s32.totalorder %s15, 0
      %p101 = por %p99, %p100
      %p102 = scmp.ne.s32.totalorder %s91, %s94
      %p103 = scmp.eq.s32.totalorder %s20, 1
      %p104 = por %p102, %p103
      %p105 = scmp.ne.s32.totalorder %s94, %s95
      %p106 = scmp.eq.s32.totalorder %s20, 0
      %p107 = por %p105, %p106
      %p108 = scmp.ne.s32.totalorder %s94, %s95
      %p109 = scmp.eq.s32.totalorder %s21, 1
      %p110 = por %p108, %p109
      %p112 = scmp.ne.s32.totalorder %s95, %s111
      %p113 = scmp.eq.s32.totalorder %s21, 0
      %p114 = por %p112, %p113
      %p115 = scmp.le.s32.totalorder 1, %s15
      %p116 = scmp.lt.s32.totalorder %s15, 3
      %p117 = pnand %p115, %p116
      %p118 = pneg %p117
      // Predicated region
      $region9: #{tpu_custom_call.1} parent=5 // pred_check
        _
      $region10: #{tpu_custom_call.1} parent=5 // pred_check_branch
        %120 = sbr.rel (%p117) target = $region12
      $region11: #{tpu_custom_call.1} parent=5 // pred_region
        %s121 = ssub.s32 %s15, 1
      $region12: #{tpu_custom_call.1} parent=5 // pred_fallthru
        _
      %p122 = scmp.lt.s32.totalorder %s15, 2
      // Predicated region
      $region13: #{tpu_custom_call.1} parent=5 // pred_check
        %p123 = pneg %p122
      $region14: #{tpu_custom_call.1} parent=5 // pred_check_branch
        %125 = sbr.rel (%p123) target = $region16
      $region15: #{tpu_custom_call.1} parent=5 // pred_region
        // Predicated region
        $region17: #{tpu_custom_call.1} parent=15 // pred_check
          %p126 = pneg %p49
        $region18: #{tpu_custom_call.1} parent=15 // pred_check_branch
          %128 = sbr.rel (%p126) target = $region20
        $region19: #{tpu_custom_call.1} parent=15 // pred_region
          %s129 = smul.u32 16, %s23
          %p130 = scmp.lt.s32.totalorder %s22, 1
          %s131 = scalar_select %p130, %s22, 1
          %p132 = scmp.lt.s32.totalorder %s129, 15
          %s133 = scalar_select %p132, %s129, 15
          %s134 = smul.addr %s133, 2
          %s135 = smul.addr %s131, 32
          %s136 = sadd.s32 %s134, %s135
          %s137 = smul.addr %s136, 8
          %s138 = scalar_lea.vmem %s0, %s137
          %s139 = smul.u32 16, %s23
        $region20: #{tpu_custom_call.1} parent=15 // pred_fallthru
          _
      $region16: #{tpu_custom_call.1} parent=5 // pred_fallthru
        _
      %p140 = scmp.le.s32.totalorder 1, %s15
      %p141 = scmp.lt.s32.totalorder %s15, 3
      %p142 = pnand %p140, %p141
      %p143 = pneg %p142
      // Predicated region
      $region21: #{tpu_custom_call.1} parent=5 // pred_check
        _
      $region22: #{tpu_custom_call.1} parent=5 // pred_check_branch
        %145 = sbr.rel (%p142) target = $region24
      $region23: #{tpu_custom_call.1} parent=5 // pred_region
        %s146 = ssub.s32 %s15, 1
        %s147 = smul.u32 16, %s25
        %p148 = scmp.lt.s32.totalorder %s24, 1
        %s149 = scalar_select %p148, %s24, 1
        %p150 = scmp.lt.s32.totalorder %s147, 15
        %s151 = scalar_select %p150, %s147, 15
        %s152 = smul.addr %s151, 2
        %s153 = smul.addr %s149, 32
        %s154 = sadd.s32 %s152, %s153
        %s155 = smul.addr %s154, 8
        %s156 = scalar_lea.vmem %s0, %s155
        %p157 = pneg %p55
        %p158 = pneg %p52
        %p159 = pneg %p81
        %p160 = pneg %p78
        %s161 = sand.u32 %s68, 1
        %s162 = scalar_lea.sflag [#allocation5], %s161
        %s163 = sand.u32 %s68, 1
        %s164 = scalar_lea.vmem [#allocation4], %s163
        %p165 = pneg %p107
        %p166 = pneg %p104
        %s167 = sand.u32 %s94, 1
        %s168 = scalar_lea.sflag [#allocation7], %s167
        %s169 = sand.u32 %s94, 1
        %s170 = scalar_lea.vmem [#allocation6], %s169
        %s171 = smul.u32 16, %s25
        %p172 = scmp.lt.s32.totalorder %s24, 1
        %s173 = scalar_select %p172, %s24, 1
        %p174 = scmp.lt.s32.totalorder %s171, 15
        %s175 = scalar_select %p174, %s171, 15
        %s176 = smul.addr %s175, 2
        %s177 = smul.addr %s173, 32
        %s178 = sadd.s32 %s176, %s177
        %s179 = smul.addr %s178, 8
        %s180 = scalar_lea.vmem %s0, %s179
        %s181 = smul.u32 16, %s25
        %p182 = scmp.eq.s32.totalorder %s25, 0
        // Predicated region
        $region25: #{tpu_custom_call.1} parent=23 // pred_check
          %p183 = pneg %p182
        $region26: #{tpu_custom_call.1} parent=23 // pred_check_branch
          %185 = sbr.rel (%p183) target = $region28
        $region27: #{tpu_custom_call.1} parent=23 // pred_region
          %vm186 = vcmask 24576
          %187 = vst.msk [vmem:[#allocation2] sm:$0x1] %vm186, 0.0
          %188 = vst.msk [vmem:[#allocation3] sm:$0x1] %vm186, 0.0
        $region28: #{tpu_custom_call.1} parent=23 // pred_fallthru
          _
        %v189 = vld [vmem:[%s180] sm:$0xff]
        %v190 = vld [vmem:[%s180 + $0x8] sm:$0xff]
        %v191 = vld [vmem:[%s180 + $0x10] sm:$0xff]
        %v192 = vld [vmem:[%s180 + $0x18] sm:$0xff]
        %v193 = vld [vmem:[%s180 + $0x20] sm:$0xff]
        %v194 = vld [vmem:[%s180 + $0x28] sm:$0xff]
        %v195 = vld [vmem:[%s180 + $0x30] sm:$0xff]
        %v196 = vld [vmem:[%s180 + $0x38] sm:$0xff]
        %v197 = vld [vmem:[%s180 + $0x40] sm:$0xff]
        %v198 = vld [vmem:[%s180 + $0x48] sm:$0xff]
        %v199 = vld [vmem:[%s180 + $0x50] sm:$0xff]
        %v200 = vld [vmem:[%s180 + $0x58] sm:$0xff]
        %v201 = vld [vmem:[%s180 + $0x60] sm:$0xff]
        %v202 = vld [vmem:[%s180 + $0x68] sm:$0xff]
        %v203 = vld [vmem:[%s180 + $0x70] sm:$0xff]
        %v204 = vld [vmem:[%s180 + $0x78] sm:$0xff]
        %v205 = vld [vmem:[%s180 + $0x80] sm:$0xff]
        %v206 = vld [vmem:[%s180 + $0x88] sm:$0xff]
        %v207 = vld [vmem:[%s180 + $0x90] sm:$0xff]
        %v208 = vld [vmem:[%s180 + $0x98] sm:$0xff]
        %v209 = vld [vmem:[%s180 + $0xa0] sm:$0xff]
        %v210 = vld [vmem:[%s180 + $0xa8] sm:$0xff]
        %v211 = vld [vmem:[%s180 + $0xb0] sm:$0xff]
        %v212 = vld [vmem:[%s180 + $0xb8] sm:$0xff]
        %v213 = vld [vmem:[%s180 + $0xc0] sm:$0xff]
        %v214 = vld [vmem:[%s180 + $0xc8] sm:$0xff]
        %v215 = vld [vmem:[%s180 + $0xd0] sm:$0xff]
        %v216 = vld [vmem:[%s180 + $0xd8] sm:$0xff]
        %v217 = vld [vmem:[%s180 + $0xe0] sm:$0xff]
        %v218 = vld [vmem:[%s180 + $0xe8] sm:$0xff]
        %v219 = vld [vmem:[%s180 + $0xf0] sm:$0xff]
        %v220 = vld [vmem:[%s180 + $0xf8] sm:$0xff]
        %v221 = vld [vmem:[#allocation2] sm:$0x1]
        %vm222 = vcmask 31744
        %v223 = vsel %vm222, %v189, 0.0
        %v224 = vsel %vm222, %v190, 0.0
        %v225 = vadd.f32 %v223, %v224
        %v226 = vsel %vm222, %v191, 0.0
        %v227 = vadd.f32 %v225, %v226
        %v228 = vsel %vm222, %v192, 0.0
        %v229 = vadd.f32 %v227, %v228
        %v230 = vsel %vm222, %v193, 0.0
        %v231 = vadd.f32 %v229, %v230
        %v232 = vsel %vm222, %v194, 0.0
        %v233 = vadd.f32 %v231, %v232
        %v234 = vsel %vm222, %v195, 0.0
        %v235 = vadd.f32 %v233, %v234
        %v236 = vsel %vm222, %v196, 0.0
        %v237 = vadd.f32 %v235, %v236
        %v238 = vsel %vm222, %v197, 0.0
        %v239 = vadd.f32 %v237, %v238
        %v240 = vsel %vm222, %v198, 0.0
        %v241 = vadd.f32 %v239, %v240
        %v242 = vsel %vm222, %v199, 0.0
        %v243 = vadd.f32 %v241, %v242
        %v244 = vsel %vm222, %v200, 0.0
        %v245 = vadd.f32 %v243, %v244
        %v246 = vsel %vm222, %v201, 0.0
        %v247 = vadd.f32 %v245, %v246
        %v248 = vsel %vm222, %v202, 0.0
        %v249 = vadd.f32 %v247, %v248
        %v250 = vsel %vm222, %v203, 0.0
        %v251 = vadd.f32 %v249, %v250
        %v252 = vsel %vm222, %v204, 0.0
        %v253 = vadd.f32 %v251, %v252
        %v254 = vsel %vm222, %v205, 0.0
        %v255 = vadd.f32 %v253, %v254
        %v256 = vsel %vm222, %v206, 0.0
        %v257 = vadd.f32 %v255, %v256
        %v258 = vsel %vm222, %v207, 0.0
        %v259 = vadd.f32 %v257, %v258
        %v260 = vsel %vm222, %v208, 0.0
        %v261 = vadd.f32 %v259, %v260
        %v262 = vsel %vm222, %v209, 0.0
        %v263 = vadd.f32 %v261, %v262
        %v264 = vsel %vm222, %v210, 0.0
        %v265 = vadd.f32 %v263, %v264
        %v266 = vsel %vm222, %v211, 0.0
        %v267 = vadd.f32 %v265, %v266
        %v268 = vsel %vm222, %v212, 0.0
        %v269 = vadd.f32 %v267, %v268
        %v270 = vsel %vm222, %v213, 0.0
        %v271 = vadd.f32 %v269, %v270
        %v272 = vsel %vm222, %v214, 0.0
        %v273 = vadd.f32 %v271, %v272
        %v274 = vsel %vm222, %v215, 0.0
        %v275 = vadd.f32 %v273, %v274
        %v276 = vsel %vm222, %v216, 0.0
        %v277 = vadd.f32 %v275, %v276
        %v278 = vsel %vm222, %v217, 0.0
        %v279 = vadd.f32 %v277, %v278
        %v280 = vsel %vm222, %v218, 0.0
        %v281 = vadd.f32 %v279, %v280
        %v282 = vsel %vm222, %v219, 0.0
        %v283 = vadd.f32 %v281, %v282
        %v284 = vsel %vm222, %v220, 0.0
        %v285 = vadd.f32 %v283, %v284
        %v286 = vrot.slane %v285, 4
        %v287 = vadd.f32 %v285, %v286
        %v288 = vrot.slane %v287, 2
        %v289 = vadd.f32 %v287, %v288
        %v290 = vrot.slane %v289, 1
        %v291 = vadd.f32 %v289, %v290
        %v292 = vadd.f32 %v221, %v291
        %vm293 = vcmask 24576
        %294 = vst.msk [vmem:[#allocation2] sm:$0x1] %vm293, %v292
        %v295 = vld [vmem:[#allocation3] sm:$0x1]
        %v296 = vmul.f32 %v189, %v189
        %v297 = vmul.f32 %v190, %v190
        %v298 = vmul.f32 %v191, %v191
        %v299 = vmul.f32 %v192, %v192
        %v300 = vmul.f32 %v193, %v193
        %v301 = vmul.f32 %v194, %v194
        %v302 = vmul.f32 %v195, %v195
        %v303 = vmul.f32 %v196, %v196
        %v304 = vmul.f32 %v197, %v197
        %v305 = vmul.f32 %v198, %v198
        %v306 = vmul.f32 %v199, %v199
        %v307 = vmul.f32 %v200, %v200
        %v308 = vmul.f32 %v201, %v201
        %v309 = vmul.f32 %v202, %v202
        %v310 = vmul.f32 %v203, %v203
        %v311 = vmul.f32 %v204, %v204
        %v312 = vmul.f32 %v205, %v205
        %v313 = vmul.f32 %v206, %v206
        %v314 = vmul.f32 %v207, %v207
        %v315 = vmul.f32 %v208, %v208
        %v316 = vmul.f32 %v209, %v209
        %v317 = vmul.f32 %v210, %v210
        %v318 = vmul.f32 %v211, %v211
        %v319 = vmul.f32 %v212, %v212
        %v320 = vmul.f32 %v213, %v213
        %v321 = vmul.f32 %v214, %v214
        %v322 = vmul.f32 %v215, %v215
        %v323 = vmul.f32 %v216, %v216
        %v324 = vmul.f32 %v217, %v217
        %v325 = vmul.f32 %v218, %v218
        %v326 = vmul.f32 %v219, %v219
        %v327 = vmul.f32 %v220, %v220
        %v328 = vsel %vm222, %v296, 0.0
        %v329 = vsel %vm222, %v297, 0.0
        %v330 = vadd.f32 %v328, %v329
        %v331 = vsel %vm222, %v298, 0.0
        %v332 = vadd.f32 %v330, %v331
        %v333 = vsel %vm222, %v299, 0.0
        %v334 = vadd.f32 %v332, %v333
        %v335 = vsel %vm222, %v300, 0.0
        %v336 = vadd.f32 %v334, %v335
        %v337 = vsel %vm222, %v301, 0.0
        %v338 = vadd.f32 %v336, %v337
        %v339 = vsel %vm222, %v302, 0.0
        %v340 = vadd.f32 %v338, %v339
        %v341 = vsel %vm222, %v303, 0.0
        %v342 = vadd.f32 %v340, %v341
        %v343 = vsel %vm222, %v304, 0.0
        %v344 = vadd.f32 %v342, %v343
        %v345 = vsel %vm222, %v305, 0.0
        %v346 = vadd.f32 %v344, %v345
        %v347 = vsel %vm222, %v306, 0.0
        %v348 = vadd.f32 %v346, %v347
        %v349 = vsel %vm222, %v307, 0.0
        %v350 = vadd.f32 %v348, %v349
        %v351 = vsel %vm222, %v308, 0.0
        %v352 = vadd.f32 %v350, %v351
        %v353 = vsel %vm222, %v309, 0.0
        %v354 = vadd.f32 %v352, %v353
        %v355 = vsel %vm222, %v310, 0.0
        %v356 = vadd.f32 %v354, %v355
        %v357 = vsel %vm222, %v311, 0.0
        %v358 = vadd.f32 %v356, %v357
        %v359 = vsel %vm222, %v312, 0.0
        %v360 = vadd.f32 %v358, %v359
        %v361 = vsel %vm222, %v313, 0.0
        %v362 = vadd.f32 %v360, %v361
        %v363 = vsel %vm222, %v314, 0.0
        %v364 = vadd.f32 %v362, %v363
        %v365 = vsel %vm222, %v315, 0.0
        %v366 = vadd.f32 %v364, %v365
        %v367 = vsel %vm222, %v316, 0.0
        %v368 = vadd.f32 %v366, %v367
        %v369 = vsel %vm222, %v317, 0.0
        %v370 = vadd.f32 %v368, %v369
        %v371 = vsel %vm222, %v318, 0.0
        %v372 = vadd.f32 %v370, %v371
        %v373 = vsel %vm222, %v319, 0.0
        %v374 = vadd.f32 %v372, %v373
        %v375 = vsel %vm222, %v320, 0.0
        %v376 = vadd.f32 %v374, %v375
        %v377 = vsel %vm222, %v321, 0.0
        %v378 = vadd.f32 %v376, %v377
        %v379 = vsel %vm222, %v322, 0.0
        %v380 = vadd.f32 %v378, %v379
        %v381 = vsel %vm222, %v323, 0.0
        %v382 = vadd.f32 %v380, %v381
        %v383 = vsel %vm222, %v324, 0.0
        %v384 = vadd.f32 %v382, %v383
        %v385 = vsel %vm222, %v325, 0.0
        %v386 = vadd.f32 %v384, %v385
        %v387 = vsel %vm222, %v326, 0.0
        %v388 = vadd.f32 %v386, %v387
        %v389 = vsel %vm222, %v327, 0.0
        %v390 = vadd.f32 %v388, %v389
        %v391 = vrot.slane %v390, 4
        %v392 = vadd.f32 %v390, %v391
        %v393 = vrot.slane %v392, 2
        %v394 = vadd.f32 %v392, %v393
        %v395 = vrot.slane %v394, 1
        %v396 = vadd.f32 %v394, %v395
        %v397 = vadd.f32 %v295, %v396
        %398 = vst.msk [vmem:[#allocation3] sm:$0x1] %vm293, %v397
        // Predicated region
        $region29: #{tpu_custom_call.1} parent=23 // pred_check
          %p399 = pneg %p182
        $region30: #{tpu_custom_call.1} parent=23 // pred_check_branch
          %401 = sbr.rel (%p399) target = $region32
        $region31: #{tpu_custom_call.1} parent=23 // pred_region
          %v402 = vld [vmem:[#allocation2] sm:$0x1]
          %v403 = vrcp.pop 256.0
          %v404 = vmul.f32 %v402, %v403
          %v405 = vld [vmem:[#allocation3] sm:$0x1]
          %v406 = vmul.f32 %v405, %v403
          %v407 = vmul.f32 %v404, %v404
          %v408 = vsub.f32 %v406, %v407
          %v409 = vmax.f32 %v408, 0.0
          %410 = vst.msk [vmem:[%s164] sm:$0x1] %vm293, %v404
          %v411 = vadd.f32 %v409, 1e-05
          %v412 = vrsqrt.pop %v411
          %413 = vst.msk [vmem:[%s170] sm:$0x1] %vm293, %v412
        $region32: #{tpu_custom_call.1} parent=23 // pred_fallthru
          _
        %s414 = sand.u32 %s68, 1
        %s415 = scalar_lea.sflag [#allocation5], %s414
        %s416 = sand.u32 %s68, 1
        %s417 = scalar_lea.vmem [#allocation4], %s416
        %s418 = sand.u32 %s94, 1
        %s419 = scalar_lea.sflag [#allocation7], %s418
        %s420 = sand.u32 %s94, 1
        %s421 = scalar_lea.vmem [#allocation6], %s420
        // Predicated region
        $region33: #{tpu_custom_call.1} parent=23 // pred_check
          %p422 = pneg %p78
        $region34: #{tpu_custom_call.1} parent=23 // pred_check_branch
          %424 = sbr.rel (%p422) target = $region36
        $region35: #{tpu_custom_call.1} parent=23 // pred_region
          %s426 = ssub.s32 16, 16
          %427 = vsyncadd %s415, %s426
          %s428 = smul.addr %s24, 16
          %s429 = scalar_lea.hbm %s1, %s428
          %s431 = sshll.u32 %s417, 4
          %s432 = int_to_ptr.vmem [resolvable:$true] %s431
          %434 = dma.vmem_to_hbm [thread:$0]  %s432, 16, %s429, %s415
        $region36: #{tpu_custom_call.1} parent=23 // pred_fallthru
          _
        // Predicated region
        $region37: #{tpu_custom_call.1} parent=23 // pred_check
          %p435 = pneg %p104
        $region38: #{tpu_custom_call.1} parent=23 // pred_check_branch
          %437 = sbr.rel (%p435) target = $region40
        $region39: #{tpu_custom_call.1} parent=23 // pred_region
          %s439 = ssub.s32 16, 16
          %440 = vsyncadd %s419, %s439
          %s441 = smul.addr %s24, 16
          %s442 = scalar_lea.hbm %s2, %s441
          %s444 = sshll.u32 %s421, 4
          %s445 = int_to_ptr.vmem [resolvable:$true] %s444
          %447 = dma.vmem_to_hbm [thread:$0]  %s445, 16, %s442, %s419
        $region40: #{tpu_custom_call.1} parent=23 // pred_fallthru
          _
      $region24: #{tpu_custom_call.1} parent=5 // pred_fallthru
        _
      %p448 = scmp.le.s32.totalorder 2, %s15
      // Predicated region
      $region41: #{tpu_custom_call.1} parent=5 // pred_check
        %p449 = pneg %p448
      $region42: #{tpu_custom_call.1} parent=5 // pred_check_branch
        %451 = sbr.rel (%p449) target = $region44
      $region43: #{tpu_custom_call.1} parent=5 // pred_region
        %s452 = ssub.s32 %s15, 2
        // Predicated region
        $region45: #{tpu_custom_call.1} parent=43 // pred_check
          %p453 = pneg %p84
        $region46: #{tpu_custom_call.1} parent=43 // pred_check_branch
          %455 = sbr.rel (%p453) target = $region48
        $region47: #{tpu_custom_call.1} parent=43 // pred_region
          %s456 = sand.u32 %s69, 1
          %s457 = scalar_lea.sflag [#allocation5], %s456
          %s458 = sand.u32 %s69, 1
          %s459 = scalar_lea.vmem [#allocation4], %s458
          %460 = dma.done %s457, 16
        $region48: #{tpu_custom_call.1} parent=43 // pred_fallthru
          _
        // Predicated region
        $region49: #{tpu_custom_call.1} parent=43 // pred_check
          %p461 = pneg %p110
        $region50: #{tpu_custom_call.1} parent=43 // pred_check_branch
          %463 = sbr.rel (%p461) target = $region52
        $region51: #{tpu_custom_call.1} parent=43 // pred_region
          %s464 = sand.u32 %s95, 1
          %s465 = scalar_lea.sflag [#allocation7], %s464
          %s466 = sand.u32 %s95, 1
          %s467 = scalar_lea.vmem [#allocation6], %s466
          %468 = dma.done %s465, 16
        $region52: #{tpu_custom_call.1} parent=43 // pred_fallthru
          _
      $region44: #{tpu_custom_call.1} parent=5 // pred_fallthru
        _
    $region6: #{tpu_custom_call.1} parent=1 // loop_footer
      %s19 = sadd.s32 1, %s15
    $region7: #{tpu_custom_call.1} parent=1 // loop_footer_branch
      %14 = sbr.rel target = $region3
    $region8: #{tpu_custom_call.1} parent=1 // loop_exit
      _
    %469 = vsyncpa [#allocation5], 1
    %s470 = scalar_lea.sflag [#allocation5], 1
    %471 = vsyncpa %s470, 1
    %472 = vsyncpa [#allocation7], 1
    %s473 = scalar_lea.sflag [#allocation7], 1
    %474 = vsyncpa %s473, 1

</llo_original>
